<compile_context>
chip_gen: v5e
topology: v5e:2x2
jax: 0.10.0
libtpu: 0.0.40
codegen_flags: <defaults>
</compile_context>

<pallas_src>
import math
import functools

import jax
import jax.numpy as jnp
from jax import lax
from jax.experimental import pallas as pl
from jax.experimental.pallas import tpu as pltpu


def _pick_vmem_limit():
    """Generous on 128 MiB parts (v5e/v6e), conservative 48 MiB fallback (v7x)."""
    try:
        info = pltpu.get_tpu_info()
        cap = getattr(info, "vmem_capacity_bytes", None)
        if cap:
            return min(int(cap) * 3 // 4, 112 * 1024 * 1024)
    except Exception:
        pass
    return 48 * 1024 * 1024


_VMEM_LIMIT = _pick_vmem_limit()


def _fit(dim, target, aligns=(128, 8, 1)):
    """Largest aligned divisor of `dim` that is <= target; `dim` if it already fits.

    Never falls back to the full dim when an aligned divisor exists (avoids the
    VMEM blow-up of the old full-dimension fallback).
    # TODO(synk): pad instead of falling back to full dim for pathological dims.
    """
    if dim <= target:
        return dim
    for align in aligns:
        t = (target // align) * align
        while t >= align:
            if dim % t == 0:
                return t
            t -= align
    return dim


# ----------------------------------------------------------------------------
# Kernel 1: tiled linear  y = x @ W + b  (bf16 operands, f32 accumulation)
# ----------------------------------------------------------------------------
def _linear_kernel(x_ref, w_ref, b_ref, o_ref, acc_ref):
    kk = pl.program_id(2)

    @pl.when(kk == 0)
    def _init():
        acc_ref[...] = jnp.zeros_like(acc_ref)

    acc_ref[...] += jnp.dot(
        x_ref[...].astype(jnp.bfloat16),
        w_ref[...].astype(jnp.bfloat16),
        preferred_element_type=jnp.float32,
    )

    @pl.when(kk == pl.num_programs(2) - 1)
    def _finalize():
        o_ref[...] = (acc_ref[...] + b_ref[...]).astype(o_ref.dtype)


def linear_tiled(x, w, b, out_dtype=jnp.bfloat16, tm=512, tn=512, tk=512):
    """x: (M, K); w: (K, N); b: (N,) -> (M, N) in out_dtype."""
    M, K = x.shape
    K2, N = w.shape
    assert K == K2
    tm = _fit(M, tm, aligns=(128, 8))     # row tile: multiple of 8 (or full dim)
    tn = _fit(N, tn, aligns=(128,))       # lane tiles: multiple of 128 (or full dim)
    tk = _fit(K, tk, aligns=(128,))
    b2 = b.reshape(1, N).astype(jnp.float32)

    return pl.pallas_call(
        _linear_kernel,
        out_shape=jax.ShapeDtypeStruct((M, N), out_dtype),
        grid=(M // tm, N // tn, K // tk),
        in_specs=[
            pl.BlockSpec((tm, tk), lambda i, j, kk: (i, kk)),
            pl.BlockSpec((tk, tn), lambda i, j, kk: (kk, j)),
            pl.BlockSpec((1, tn), lambda i, j, kk: (0, j)),
        ],
        out_specs=pl.BlockSpec((tm, tn), lambda i, j, kk: (i, j)),
        scratch_shapes=[pltpu.VMEM((tm, tn), jnp.float32)],
        compiler_params=pltpu.CompilerParams(
            dimension_semantics=("parallel", "parallel", "arbitrary"),
            vmem_limit_bytes=_VMEM_LIMIT,
        ),
    )(x.astype(jnp.bfloat16), w.astype(jnp.bfloat16), b2)


# ----------------------------------------------------------------------------
# Kernel 2a: attention, one head per grid step (d_k % 128 == 0, no slicing)
#   q block (tq, d_k), k/v blocks (S_kv, d_k), optional bias (tq, S_kv) bf16.
# ----------------------------------------------------------------------------
def _attn_perhead_kernel(*refs, has_bias):
    if has_bias:
        q_ref, k_ref, v_ref, bias_ref, o_ref = refs
    else:
        q_ref, k_ref, v_ref, o_ref = refs
        bias_ref = None

    # q is already scaled by 1/sqrt(d_k) via the projection weights.
    s = lax.dot_general(
        q_ref[...], k_ref[...], (((1,), (1,)), ((), ())),
        preferred_element_type=jnp.float32,
    )
    if bias_ref is not None:
        s = s + bias_ref[...].astype(jnp.float32)

    s = s - jnp.max(s, axis=-1, keepdims=True)
    p = jnp.exp(s)                                   # f32 (v5e: no bf16 EUP)
    p = p * pl.reciprocal(jnp.sum(p, axis=-1, keepdims=True), approx=True)

    o_ref[...] = jnp.dot(
        p.astype(jnp.bfloat16), v_ref[...], preferred_element_type=jnp.float32
    ).astype(o_ref.dtype)


# ----------------------------------------------------------------------------
# Kernel 2b: attention, all heads per grid step (d_k < 128).
#   Per-head contexts accumulate into a (tq, D) f32 VMEM scratch; one
#   full-width lane-dense store at the end (no concatenate).
# ----------------------------------------------------------------------------
def _attn_packed_kernel(*refs, d_model, num_heads, q_off, k_off, v_off, has_bias):
    if has_bias:
        q_ref, k_ref, v_ref, bias_ref, o_ref, ctx = refs
    else:
        q_ref, k_ref, v_ref, o_ref, ctx = refs
        bias_ref = None

    d_k = d_model // num_heads
    q = q_ref[...][:, q_off:q_off + d_model]     # (tq,  D) bf16, pre-scaled
    k = k_ref[...][:, k_off:k_off + d_model]     # (S_kv, D) bf16
    v = v_ref[...][:, v_off:v_off + d_model]     # (S_kv, D) bf16
    bias = bias_ref[...].astype(jnp.float32) if bias_ref is not None else None

    for h in range(num_heads):                   # static unroll over heads
        lo = h * d_k
        s = lax.dot_general(
            q[:, lo:lo + d_k], k[:, lo:lo + d_k], (((1,), (1,)), ((), ())),
            preferred_element_type=jnp.float32,
        )
        if bias is not None:
            s = s + bias
        s = s - jnp.max(s, axis=-1, keepdims=True)
        p = jnp.exp(s)
        p = p * pl.reciprocal(jnp.sum(p, axis=-1, keepdims=True), approx=True)
        ctx[:, lo:lo + d_k] = jnp.dot(
            p.astype(jnp.bfloat16), v[:, lo:lo + d_k],
            preferred_element_type=jnp.float32,
        )

    o_ref[...] = ctx[...].astype(o_ref.dtype)    # single full-width store


def attention(q_arr, k_arr, v_arr, bias, per_batch_bias, d_model, num_heads,
              q_col0=0, k_col0=0, v_col0=0, out_dtype=jnp.bfloat16):
    """q_arr: (B, S_q, Wq); k_arr/v_arr: (B, S_kv, Wk/Wv).  The three arrays may
    be the same fused (B, S, 3D) buffer with column offsets, or distinct (B,S,D)
    projections (cross-attention, possibly with S_q != S_kv).
    bias: optional (B_m, S_q, S_kv) bf16 additive mask bias."""
    B, S_q, _ = q_arr.shape
    _, S_kv, _ = k_arr.shape
    d_k = d_model // num_heads
    tq = _fit(S_q, 512, aligns=(128, 8))          # query-row tile
    has_bias = bias is not None

    if d_k % 128 == 0:
        # ---- heads on the grid, aligned d_k column blocks ----
        grid = (B, S_q // tq, num_heads)
        q_base, k_base, v_base = q_col0 // d_k, k_col0 // d_k, v_col0 // d_k
        in_specs = [
            pl.BlockSpec((None, tq, d_k), lambda b, qi, h, _o=q_base: (b, qi, _o + h)),
            pl.BlockSpec((None, S_kv, d_k), lambda b, qi, h, _o=k_base: (b, 0, _o + h)),
            pl.BlockSpec((None, S_kv, d_k), lambda b, qi, h, _o=v_base: (b, 0, _o + h)),
        ]
        args = [q_arr, k_arr, v_arr]
        if has_bias:
            bmap = ((lambda b, qi, h: (b, qi, 0)) if per_batch_bias
                    else (lambda b, qi, h: (0, qi, 0)))
            in_specs.append(pl.BlockSpec((None, tq, S_kv), bmap))
            args.append(bias)
        out_spec = pl.BlockSpec((None, tq, d_k), lambda b, qi, h: (b, qi, h))
        kernel = functools.partial(_attn_perhead_kernel, has_bias=has_bias)
        scratch = []
        sem = ("parallel", "parallel", "arbitrary")   # h innermost -> bias resident
    else:
        # ---- all heads per step; pick lane-aligned (or full) column blocks ----
        grid = (B, S_q // tq)

        def width_blk_off(arr, col0):
            w_arr = arr.shape[-1]
            if w_arr == d_model:                     # distinct projection array
                return d_model, 0, 0
            if d_model % 128 == 0:                   # fused array, aligned D blocks
                return d_model, col0 // d_model, 0
            return w_arr, 0, col0                    # fused, unaligned: full width

        q_w, q_blk, q_off = width_blk_off(q_arr, q_col0)
        k_w, k_blk, k_off = width_blk_off(k_arr, k_col0)
        v_w, v_blk, v_off = width_blk_off(v_arr, v_col0)

        in_specs = [
            pl.BlockSpec((None, tq, q_w), lambda b, qi, _c=q_blk: (b, qi, _c)),
            pl.BlockSpec((None, S_kv, k_w), lambda b, qi, _c=k_blk: (b, 0, _c)),
            pl.BlockSpec((None, S_kv, v_w), lambda b, qi, _c=v_blk: (b, 0, _c)),
        ]
        args = [q_arr, k_arr, v_arr]
        if has_bias:
            bmap = ((lambda b, qi: (b, qi, 0)) if per_batch_bias
                    else (lambda b, qi: (0, qi, 0)))
            in_specs.append(pl.BlockSpec((None, tq, S_kv), bmap))
            args.append(bias)
        out_spec = pl.BlockSpec((None, tq, d_model), lambda b, qi: (b, qi, 0))
        kernel = functools.partial(
            _attn_packed_kernel, d_model=d_model, num_heads=num_heads,
            q_off=q_off, k_off=k_off, v_off=v_off, has_bias=has_bias)
        scratch = [pltpu.VMEM((tq, d_model), jnp.float32)]
        sem = ("parallel", "parallel")

    return pl.pallas_call(
        kernel,
        out_shape=jax.ShapeDtypeStruct((B, S_q, d_model), out_dtype),
        grid=grid,
        in_specs=in_specs,
        out_specs=out_spec,
        scratch_shapes=scratch,
        compiler_params=pltpu.CompilerParams(
            dimension_semantics=sem,
            vmem_limit_bytes=_VMEM_LIMIT,
        ),
    )(*args)


# ----------------------------------------------------------------------------
# Mask -> compact additive bias (bf16, batch dim dropped when broadcast)
# ----------------------------------------------------------------------------
def _mask_to_bias(mask, B, S_q, S_kv):
    if mask is None:
        return None, False
    m = jnp.asarray(mask, jnp.float32)
    if m.ndim == 4:
        assert m.shape[1] == 1, "per-head masks not supported"  # TODO(synk)
        m = m[:, 0]
    elif m.ndim == 2:
        m = m[None]
    B_m = m.shape[0]
    m = jnp.broadcast_to(m, (B_m, S_q, S_kv))
    bias = ((1.0 - m) * (-1.0e10)).astype(jnp.bfloat16)
    return bias, (B_m == B)


# ----------------------------------------------------------------------------
# Full forward pass (glue in plain JAX, hot paths in Pallas, no HBM transposes)
# ----------------------------------------------------------------------------
def mha_forward(q, k, v, mask, params, num_heads):
    B, S_q, D = q.shape
    S_kv = k.shape[1]
    d_k = D // num_heads
    scale = 1.0 / math.sqrt(d_k)

    bias, per_batch = _mask_to_bias(mask, B, S_q, S_kv)

    # fold 1/sqrt(d_k) into the q projection (free; no in-kernel score scaling)
    wq, bq = params["w_q"] * scale, params["b_q"] * scale

    # NOTE: fused-QKV dispatch uses object identity; equal-but-distinct arrays
    # take the (still efficient) general path.
    if (q is k) and (k is v):
        # self-attention: fused QKV projection -> activation read from HBM once
        w_qkv = jnp.concatenate([wq, params["w_k"], params["w_v"]], axis=1)
        b_qkv = jnp.concatenate([bq, params["b_k"], params["b_v"]])
        qkv = linear_tiled(q.reshape(B * S_q, D), w_qkv, b_qkv).reshape(B, S_q, 3 * D)
        ctx = attention(qkv, qkv, qkv, bias, per_batch, D, num_heads,
                        q_col0=0, k_col0=D, v_col0=2 * D)
    else:
        # cross-attention: separate projections, NO HBM concat; S_q may differ
        # from S_kv.
        q2d = linear_tiled(q.reshape(B * S_q, D), wq, bq).reshape(B, S_q, D)
        k2d = linear_tiled(k.reshape(B * S_kv, D), params["w_k"],
                           params["b_k"]).reshape(B, S_kv, D)
        v2d = linear_tiled(v.reshape(B * S_kv, D), params["w_v"],
                           params["b_v"]).reshape(B, S_kv, D)
        ctx = attention(q2d, k2d, v2d, bias, per_batch, D, num_heads)

    out = linear_tiled(ctx.reshape(B * S_q, D), params["w_o"], params["b_o"],
                       out_dtype=jnp.float32)
    return out.reshape(B, S_q, D)


# ----------------------------------------------------------------------------
# Deterministic parameter init (shapes from nn.Linear(d_model, d_model));
# weights stored pre-transposed as (in, out) so kernels do x @ W.
# ----------------------------------------------------------------------------
def init_params(key, d_model):
    names = ["w_q", "w_k", "w_v", "w_o"]
    params = {}
    keys = jax.random.split(key, 2 * len(names))
    for i, name in enumerate(names):
        params[name] = (
            jax.random.normal(keys[2 * i], (d_model, d_model), jnp.float32) * 0.02
        )
        params["b" + name[1:]] = (
            jax.random.normal(keys[2 * i + 1], (d_model,), jnp.float32) * 0.02
        )
    return params


# ----------------------------------------------------------------------------
# Pure-JAX f32 reference (mirrors the PyTorch module in eval mode)
# ----------------------------------------------------------------------------
def mha_reference(q, k, v, mask, params, num_heads):
    B, S_q, D = q.shape
    S_kv = k.shape[1]
    d_k = D // num_heads

    def proj(x, w, b):
        S = x.shape[1]
        y = x.reshape(B * S, D) @ w + b
        return jnp.transpose(y.reshape(B, S, num_heads, d_k), (0, 2, 1, 3))

    qh = proj(q, params["w_q"], params["b_q"])
    kh = proj(k, params["w_k"], params["b_k"])
    vh = proj(v, params["w_v"], params["b_v"])
    scores = jnp.einsum("bhqd,bhkd->bhqk", qh, kh) / math.sqrt(d_k)
    if mask is not None:
        scores = scores + (1.0 - mask) * (-1.0e10)
    p = jax.nn.softmax(scores, axis=-1)
    ctx = jnp.einsum("bhqk,bhkd->bhqd", p, vh)
    ctx = jnp.transpose(ctx, (0, 2, 1, 3)).reshape(B * S_q, D)
    return (ctx @ params["w_o"] + params["b_o"]).reshape(B, S_q, D)


if __name__ == "__main__":
    # bf16 MXU operands -> compare against f32 reference with loose tolerance
    ATOL, RTOL = 1e-2, 5e-2

    def check(out, ref, name):
        assert out.shape == ref.shape, f"{name}: shape mismatch"
        assert jnp.allclose(out, ref, atol=ATOL, rtol=RTOL), f"{name}: mismatch"

    root = jax.random.PRNGKey(0)
    kx, kq, kk_, kv, kp, kx2, kp2 = jax.random.split(root, 7)

    # ------- config A: small d_k (packed-heads kernel path) -------
    B, S, D, H = 2, 8, 32, 4
    x = jax.random.normal(kx, (B, S, D), jnp.float32)    # self-attention input
    q = jax.random.normal(kq, (B, S, D), jnp.float32)    # cross-attention inputs
    k = jax.random.normal(kk_, (B, S, D), jnp.float32)
    v = jax.random.normal(kv, (B, S, D), jnp.float32)
    causal = jnp.tril(jnp.ones((S, S), jnp.float32))
    mask = jnp.broadcast_to(causal, (B, 1, S, S))
    params = init_params(kp, D)

    # 1) self-attention (fused QKV path) with mask
    out = jax.block_until_ready(mha_forward(x, x, x, mask, params, H))
    check(out, mha_reference(x, x, x, mask, params, H), "self-attn masked")

    # 2) cross-attention (general path, distinct q/k/v) with mask
    out = jax.block_until_ready(mha_forward(q, k, v, mask, params, H))
    check(out, mha_reference(q, k, v, mask, params, H), "cross-attn masked")

    # 3) self-attention, mask=None (no-bias kernel variant)
    out = jax.block_until_ready(mha_forward(x, x, x, None, params, H))
    check(out, mha_reference(x, x, x, None, params, H), "self-attn unmasked")

    # ------- config B: d_k = 128 (per-head grid kernel path) -------
    B2, S2, D2, H2 = 2, 16, 256, 2
    x2 = jax.random.normal(kx2, (B2, S2, D2), jnp.float32)
    causal2 = jnp.tril(jnp.ones((S2, S2), jnp.float32))
    mask2 = jnp.broadcast_to(causal2, (B2, 1, S2, S2))
    params2 = init_params(kp2, D2)

    out = jax.block_until_ready(mha_forward(x2, x2, x2, mask2, params2, H2))
    check(out, mha_reference(x2, x2, x2, mask2, params2, H2), "self-attn d_k=128")

    print("KERNEL_OK")
</pallas_src>

<mosaic_0001>
module attributes {stable_mosaic.version = 11 : i64} {
  func.func @_linear_kernel(%arg0: i32, %arg1: i32, %arg2: i32, %arg3: memref<16x32xbf16, #tpu.memory_space<vmem>>, %arg4: memref<32x96xbf16, #tpu.memory_space<vmem>>, %arg5: memref<1x96xf32, #tpu.memory_space<vmem>>, %arg6: memref<16x96xbf16, #tpu.memory_space<vmem>>, %arg7: memref<16x96xf32, #tpu.memory_space<vmem>>) attributes {dimension_semantics = [#tpu.dimension_semantics<parallel>, #tpu.dimension_semantics<parallel>, #tpu.dimension_semantics<arbitrary>], iteration_bounds = array<i64: 1, 1, 1>, scalar_prefetch = 0 : i64, scratch_operands = 1 : i64, tpu.core_type = #tpu.core_type<tc>, window_params = [{transform_indices = @transform_0, window_bounds = array<i64: 16, 32>}, {transform_indices = @transform_1, window_bounds = array<i64: 32, 96>}, {transform_indices = @transform_2, window_bounds = array<i64: 1, 96>}, {transform_indices = @transform_3, window_bounds = array<i64: 16, 96>}]} {
    %c0_i32 = arith.constant 0 : i32
    %0 = arith.cmpi eq, %arg2, %c0_i32 : i32
    %1 = arith.extui %0 : i1 to i32
    %c0_i32_0 = arith.constant 0 : i32
    %2 = arith.cmpi ne, %1, %c0_i32_0 : i32
    scf.if %2 {
      %cst_10 = arith.constant 0.000000e+00 : f32
      %12 = vector.broadcast %cst_10 : f32 to vector<16x96xf32>
      %c0_11 = arith.constant 0 : index
      %c0_12 = arith.constant 0 : index
      %13 = vector.load %arg7[%c0_11, %c0_12] : memref<16x96xf32, #tpu.memory_space<vmem>>, vector<16x96xf32>
      tpu.vector_store %arg7[%c0_11, %c0_12], %12 {strides = array<i32>} : memref<16x96xf32, #tpu.memory_space<vmem>>, vector<16x96xf32>,
    } else {
    }
    %c0 = arith.constant 0 : index
    %c0_1 = arith.constant 0 : index
    %3 = vector.load %arg7[%c0, %c0_1] : memref<16x96xf32, #tpu.memory_space<vmem>>, vector<16x96xf32>
    %c0_2 = arith.constant 0 : index
    %c0_3 = arith.constant 0 : index
    %4 = vector.load %arg3[%c0_2, %c0_3] : memref<16x32xbf16, #tpu.memory_space<vmem>>, vector<16x32xbf16>
    %c0_4 = arith.constant 0 : index
    %c0_5 = arith.constant 0 : index
    %5 = vector.load %arg4[%c0_4, %c0_5] : memref<32x96xbf16, #tpu.memory_space<vmem>>, vector<32x96xbf16>
    %cst = arith.constant dense<0.000000e+00> : vector<16x96xf32>
    %6 = tpu.matmul %4, %5, %cst {dimension_numbers = #tpu.dot_dimension_numbers<[1], [0], [0], [1], [0, 0, 1, 1], [], []>} : vector<16x32xbf16>, vector<32x96xbf16>, vector<16x96xf32> -> vector<16x96xf32>
    %7 = arith.addf %3, %6 : vector<16x96xf32>
    %c0_6 = arith.constant 0 : index
    %c0_7 = arith.constant 0 : index
    %8 = vector.load %arg7[%c0_6, %c0_7] : memref<16x96xf32, #tpu.memory_space<vmem>>, vector<16x96xf32>
    tpu.vector_store %arg7[%c0_6, %c0_7], %7 {strides = array<i32>} : memref<16x96xf32, #tpu.memory_space<vmem>>, vector<16x96xf32>,
    %c0_i32_8 = arith.constant 0 : i32
    %9 = arith.cmpi eq, %arg2, %c0_i32_8 : i32
    %10 = arith.extui %9 : i1 to i32
    %c0_i32_9 = arith.constant 0 : i32
    %11 = arith.cmpi ne, %10, %c0_i32_9 : i32
    scf.if %11 {
      %c0_10 = arith.constant 0 : index
      %c0_11 = arith.constant 0 : index
      %12 = vector.load %arg7[%c0_10, %c0_11] : memref<16x96xf32, #tpu.memory_space<vmem>>, vector<16x96xf32>
      %c0_12 = arith.constant 0 : index
      %c0_13 = arith.constant 0 : index
      %13 = vector.load %arg5[%c0_12, %c0_13] : memref<1x96xf32, #tpu.memory_space<vmem>>, vector<1x96xf32>
      %14 = vector.broadcast %13 : vector<1x96xf32> to vector<16x96xf32>
      %15 = arith.addf %12, %14 : vector<16x96xf32>
      %16 = arith.truncf %15 : vector<16x96xf32> to vector<16x96xbf16>
      %c0_14 = arith.constant 0 : index
      %c0_15 = arith.constant 0 : index
      %17 = vector.load %arg6[%c0_14, %c0_15] : memref<16x96xbf16, #tpu.memory_space<vmem>>, vector<16x96xbf16>
      tpu.vector_store %arg6[%c0_14, %c0_15], %16 {strides = array<i32>} : memref<16x96xbf16, #tpu.memory_space<vmem>>, vector<16x96xbf16>,
    } else {
    }
    return
  }
  func.func @transform_0(%arg0: i32, %arg1: i32, %arg2: i32) -> (i32, i32) {
    %c0_i32 = arith.constant 0 : i32
    return %arg0, %arg2 : i32, i32
  }
  func.func @transform_1(%arg0: i32, %arg1: i32, %arg2: i32) -> (i32, i32) {
    %c0_i32 = arith.constant 0 : i32
    return %arg2, %arg1 : i32, i32
  }
  func.func @transform_2(%arg0: i32, %arg1: i32, %arg2: i32) -> (i32, i32) {
    %c0_i32 = arith.constant 0 : i32
    %c0_i32_0 = arith.constant 0 : i32
    return %c0_i32, %arg1 : i32, i32
  }
  func.func @transform_3(%arg0: i32, %arg1: i32, %arg2: i32) -> (i32, i32) {
    %c0_i32 = arith.constant 0 : i32
    return %arg0, %arg1 : i32, i32
  }
}

</mosaic_0001>

<llo_original>
// kernel: tpu_custom_call.1
$region0: #{tpu_custom_call.1}
  #allocation0 [shape = 'u32[]', space=smem, size = 0x4, offset = 0x4, fixed_abs, tag = 'smem constant byte address 0x4 - core index']
  #allocation1 [shape = 'u32[72,128]{1,0:T(1,128)}', space=vmem, size = 0x9000, scoped, tag = 'internal scratch']
  #allocation2 [shape = 'f32[16,96]{1,0:T(8,128)}', space=vmem, size = 0x2000, scoped, tag = 'scratch operand']
  %s0 = inlined_call_operand.hbm [shape: bf16[16,32], index: 0, kind: input, shape index: {}]
  %s1 = inlined_call_operand.hbm [shape: bf16[32,96], index: 1, kind: input, shape index: {}]
  %s2 = inlined_call_operand.vmem [shape: f32[1,96], index: 2, kind: input, shape index: {}]
  %s3 = inlined_call_operand.hbm [shape: bf16[16,96], index: 3, kind: output, shape index: {}]
  %s4 = sld [smem:[#allocation0]]
  $region38: #{tpu_custom_call.1} parent=0
    _
  %s6 = ssub.s32 1, %s4
  %s7 = scalar_select 0, %s6, %s4
  $region1: #{tpu_custom_call.1} parent=0
    #allocation3 [shape = 'u8[4096]{0}', space=vmem, size = 0x1000, scoped, tag = 'input window, operand 0, single buffered']
    #allocation4 [shape = 's32[1]{0}', space=sflag, size = 0x4, scoped, tag = 'scoped memory for tpu_custom_call.1']
    #allocation5 [shape = 's32[1]{0}', space=sflag, size = 0x4, scoped, tag = 'scoped memory for tpu_custom_call.1']
    #allocation6 [shape = 'u8[8192]{0}', space=vmem, size = 0x2000, scoped, tag = 'input window, operand 1, single buffered']
    #allocation7 [shape = 's32[1]{0}', space=sflag, size = 0x4, scoped, tag = 'scoped memory for tpu_custom_call.1']
    #allocation8 [shape = 'u8[4096]{0}', space=vmem, size = 0x1000, scoped, tag = 'output window, operand 0, single buffered']
    %8 = vsyncpa [#allocation4], 0
    %9 = vsyncpa [#allocation7], 0
    %10 = vsyncpa [#allocation5], 0
    // Predicated region
    $region2: #{tpu_custom_call.1} parent=1 // pred_check
      _
    $region3: #{tpu_custom_call.1} parent=1 // pred_check_branch
      %12 = sbr.rel (0) target = $region5
    $region4: #{tpu_custom_call.1} parent=1 // pred_region
      %14 = vsyncadd [#allocation4], 0
      %s15 = sshll.u32 %s0, 4
      %s16 = int_to_ptr.hbm [resolvable:$true] %s15
      %s17 = sshll.u32 [#allocation3], 4
      %s18 = int_to_ptr.vmem [resolvable:$true] %s17
      %23 = dma.hbm_to_vmem [thread:$0]  %s16, 128, %s18, [#allocation4], 64, 64, 4
    $region5: #{tpu_custom_call.1} parent=1 // pred_fallthru
      _
    // Predicated region
    $region6: #{tpu_custom_call.1} parent=1 // pred_check
      _
    $region7: #{tpu_custom_call.1} parent=1 // pred_check_branch
      %25 = sbr.rel (0) target = $region9
    $region8: #{tpu_custom_call.1} parent=1 // pred_region
      %27 = vsyncadd [#allocation7], 0
      %s28 = sshll.u32 %s1, 4
      %s29 = int_to_ptr.hbm [resolvable:$true] %s28
      %s30 = sshll.u32 [#allocation6], 4
      %s31 = int_to_ptr.vmem [resolvable:$true] %s30
      %36 = dma.hbm_to_vmem [thread:$0]  %s29, 256, %s31, [#allocation7], 64, 64, 4
    $region9: #{tpu_custom_call.1} parent=1 // pred_fallthru
      _
    // Predicated region
    $region10: #{tpu_custom_call.1} parent=1 // pred_check
      _
    $region11: #{tpu_custom_call.1} parent=1 // pred_check_branch
      %38 = sbr.rel (0) target = $region13
    $region12: #{tpu_custom_call.1} parent=1 // pred_region
      _
    $region13: #{tpu_custom_call.1} parent=1 // pred_fallthru
      _
    // Predicated region
    $region14: #{tpu_custom_call.1} parent=1 // pred_check
      _
    $region15: #{tpu_custom_call.1} parent=1 // pred_check_branch
      %40 = sbr.rel (0) target = $region17
    $region16: #{tpu_custom_call.1} parent=1 // pred_region
      %42 = dma.done [#allocation4], 128
    $region17: #{tpu_custom_call.1} parent=1 // pred_fallthru
      _
    // Predicated region
    $region18: #{tpu_custom_call.1} parent=1 // pred_check
      _
    $region19: #{tpu_custom_call.1} parent=1 // pred_check_branch
      %44 = sbr.rel (0) target = $region21
    $region20: #{tpu_custom_call.1} parent=1 // pred_region
      %46 = dma.done [#allocation7], 256
    $region21: #{tpu_custom_call.1} parent=1 // pred_fallthru
      _
    %p48 = scmp.eq.s32.totalorder 0, 0
    // Predicated region
    $region22: #{tpu_custom_call.1} parent=1 // pred_check
      %p49 = pneg %p48
    $region23: #{tpu_custom_call.1} parent=1 // pred_check_branch
      %51 = sbr.rel (%p49) target = $region25
    $region24: #{tpu_custom_call.1} parent=1 // pred_region
      %vm52 = vcmask 785408
      %53 = vst.msk [vmem:[#allocation2] sm:$0xff] %vm52, 0.0
      %54 = vst.msk [vmem:[#allocation2 + $0x8] sm:$0xff] %vm52, 0.0
    $region25: #{tpu_custom_call.1} parent=1 // pred_fallthru
      _
    %v55 = vld [vmem:[#allocation2] sm:$0xff]
    %v56 = vld [vmem:[#allocation2 + $0x8] sm:$0xff]
    %v57 = vld [vmem:[#allocation3] sm:$0xf]
    %v58 = vld [vmem:[#allocation3 + $0x4] sm:$0xf]
    %v59 = vld [vmem:[#allocation6] sm:$0xf]
    %v60 = vld [vmem:[#allocation6 + $0x4] sm:$0xf]
    %v61 = vld [vmem:[#allocation6 + $0x8] sm:$0xf]
    %v62 = vld [vmem:[#allocation6 + $0xc] sm:$0xf]
    %v65 = vunpack.c.l.b16 %v57
    %v66 = vunpack.c.l.b16 %v58
    %v67 = vpack.c.b16 %v66, %v65
    %v72 = vunpack.c.l.b16 %v59
    %v73 = vunpack.c.l.b16 %v60
    %v74 = vunpack.c.l.b16 %v61
    %v75 = vunpack.c.l.b16 %v62
    %v76 = vpack.c.b16 %v73, %v72
    %v77 = vpack.c.b16 %v75, %v74
    %vm80 = vcmask 261120
    %v82 = vsel %vm80, %v67, 0
    %84 = vmatpush.bf16.msra.mxu0 0
    %85 = vmatpush.bf16.msra.mxu0 0
    %86 = vmatpush.bf16.msra.mxu0 0
    %87 = vmatpush.bf16.msra.mxu0 0
    %88 = vmatpush.bf16.msra.mxu0 0
    %89 = vmatpush.bf16.msra.mxu0 0
    %90 = vmatpush.bf16.msra.mxu0 %v77
    %91 = vmatpush.bf16.msra.mxu0 %v76
    %92 = vmatmul.bf16.gmra.mxu0 %v82
    %v93 = vpop.f32.mrf.mxu0
    %v94 = vadd.f32 0.0, %v93
    %v95 = vpop.f32.mrf.mxu0
    %v96 = vadd.f32 0.0, %v95
    %97 = vdwg.mxu0
    %v98 = vadd.f32 %v55, %v94
    %v99 = vadd.f32 %v56, %v96
    %vm100 = vcmask 785408
    %101 = vst.msk [vmem:[#allocation2] sm:$0xff] %vm100, %v98
    %102 = vst.msk [vmem:[#allocation2 + $0x8] sm:$0xff] %vm100, %v99
    // Predicated region
    $region26: #{tpu_custom_call.1} parent=1 // pred_check
      %p103 = pneg %p48
    $region27: #{tpu_custom_call.1} parent=1 // pred_check_branch
      %105 = sbr.rel (%p103) target = $region29
    $region28: #{tpu_custom_call.1} parent=1 // pred_region
      %v106 = vld [vmem:[#allocation2] sm:$0xff]
      %v107 = vld [vmem:[#allocation2 + $0x8] sm:$0xff]
      %v108 = vld [vmem:[%s2] sm:$0x1]
      %v110 = vperm.slane %v108, 0
      %v112 = vadd.f32 %v106, %v110
      %v113 = vadd.f32 %v107, %v110
      %v114 = vpack.c.bf16 %v112, %v112
      %v115 = vpack.c.bf16 %v113, %v113
      %vm116 = vcmask 781312
      %117 = vst.msk [vmem:[#allocation8] sm:$0xf] %vm116, %v114
      %118 = vst.msk [vmem:[#allocation8 + $0x4] sm:$0xf] %vm116, %v115
    $region29: #{tpu_custom_call.1} parent=1 // pred_fallthru
      _
    // Predicated region
    $region30: #{tpu_custom_call.1} parent=1 // pred_check
      _
    $region31: #{tpu_custom_call.1} parent=1 // pred_check_branch
      %120 = sbr.rel (0) target = $region33
    $region32: #{tpu_custom_call.1} parent=1 // pred_region
      %122 = vsyncadd [#allocation5], 0
      %s123 = sshll.u32 [#allocation8], 4
      %s124 = int_to_ptr.vmem [resolvable:$true] %s123
      %s125 = sshll.u32 %s3, 4
      %s126 = int_to_ptr.hbm [resolvable:$true] %s125
      %131 = dma.vmem_to_hbm [thread:$0]  %s124, 128, %s126, [#allocation5], 64, 64, 4
    $region33: #{tpu_custom_call.1} parent=1 // pred_fallthru
      _
    // Predicated region
    $region34: #{tpu_custom_call.1} parent=1 // pred_check
      _
    $region35: #{tpu_custom_call.1} parent=1 // pred_check_branch
      %133 = sbr.rel (0) target = $region37
    $region36: #{tpu_custom_call.1} parent=1 // pred_region
      %135 = dma.done [#allocation5], 128
    $region37: #{tpu_custom_call.1} parent=1 // pred_fallthru
      _
    %136 = vsyncpa [#allocation4], 1
    %137 = vsyncpa [#allocation7], 1
    %138 = vsyncpa [#allocation5], 1

</llo_original>
